<compile_context>
chip_gen: v6e
topology: v6e:2x2x1
jax: 0.10.0
libtpu: 0.0.40
codegen_flags: <defaults>
</compile_context>

<pallas_src>
import jax
import jax.numpy as jnp
from jax.experimental import pallas as pl
from jax.experimental.pallas import tpu as pltpu


# --------------------------------------------------------------------------
# Kernel: two small MXU matmuls + bias add per batch tile.
# --------------------------------------------------------------------------
def fused_kernel(x0_ref, x1_ref, w0_ref, w1_ref, b_ref, out_ref):
    acc = jnp.dot(x0_ref[...], w0_ref[...], preferred_element_type=jnp.float32)
    acc = acc + jnp.dot(x1_ref[...], w1_ref[...],
                        preferred_element_type=jnp.float32)
    out_ref[...] = acc + b_ref[...]


# --------------------------------------------------------------------------
# Weight-only transforms (done once per weight set, independent of batch).
# --------------------------------------------------------------------------
def _conv3x3_as_matrix(conv_w):
    """(1,1,3,3) padded-conv weight -> (9,9) matrix Mt with x_flat @ Mt == conv(x)_flat."""
    q = jnp.arange(9)[:, None]          # flattened input pixel index
    p = jnp.arange(9)[None, :]          # flattened output pixel index
    oi, oj = p // 3, p % 3
    ii, ij = q // 3, q % 3
    di = ii - oi + 1
    dj = ij - oj + 1
    valid = (di >= 0) & (di < 3) & (dj >= 0) & (dj < 3)
    tap = jnp.clip(di * 3 + dj, 0, 8)
    w_flat = conv_w.reshape(9).astype(jnp.float32)
    return jnp.where(valid, w_flat[tap], jnp.float32(0.0))   # (9, 9)


def parallel_forward(x0, x1, conv_w, conv_b, fc_w, fc_b, *, tb_max=4096):
    """x0, x1: (B, 1, 3, 3) NCHW float32.  Returns (B, 18) float32."""
    B = x0.shape[0]

    # Free contiguous reshapes; no concat (two separate kernel operands).
    x0f = x0.reshape(B, 9).astype(jnp.float32)
    x1f = x1.reshape(B, 9).astype(jnp.float32)

    # Fuse conv-as-matmul + FC:
    #   y0 = x0 @ Mt + cb ; y1 = x1 @ Mt + cb
    #   out = y0 @ W0 + y1 @ W1 + fc_b
    #       = x0 @ (Mt@W0) + x1 @ (Mt@W1) + cb*(colsum(W0)+colsum(W1)) + fc_b
    Mt = _conv3x3_as_matrix(conv_w)                           # (9, 9)
    W0 = jnp.transpose(fc_w[:, :9]).astype(jnp.float32)      # (9, 18)
    W1 = jnp.transpose(fc_w[:, 9:]).astype(jnp.float32)      # (9, 18)
    Wf0 = Mt @ W0                                             # (9, 18)
    Wf1 = Mt @ W1                                             # (9, 18)
    bf = (conv_b.reshape(()).astype(jnp.float32)
          * (W0.sum(axis=0) + W1.sum(axis=0))
          + fc_b.astype(jnp.float32)).reshape(1, 18)          # (1, 18)

    # Batch tiling: whole-array block for small B, otherwise tb_max-row tiles
    # with a ragged last block (Pallas masks OOB output writes; no pad/slice).
    tb = B if B <= tb_max else tb_max
    nb = pl.cdiv(B, tb)

    out = pl.pallas_call(
        fused_kernel,
        out_shape=jax.ShapeDtypeStruct((B, 18), jnp.float32),
        grid=(nb,),
        in_specs=[
            pl.BlockSpec((tb, 9), lambda i: (i, 0)),    # x0 tile
            pl.BlockSpec((tb, 9), lambda i: (i, 0)),    # x1 tile
            pl.BlockSpec((9, 18), lambda i: (0, 0)),    # fused weight 0 (resident)
            pl.BlockSpec((9, 18), lambda i: (0, 0)),    # fused weight 1 (resident)
            pl.BlockSpec((1, 18), lambda i: (0, 0)),    # fused bias (resident)
        ],
        out_specs=pl.BlockSpec((tb, 18), lambda i: (i, 0)),
        compiler_params=pltpu.CompilerParams(
            dimension_semantics=("parallel",)),
        cost_estimate=pl.CostEstimate(
            flops=2 * B * 9 * 18 * 2,
            transcendentals=0,
            bytes_accessed=B * (9 + 9 + 18) * 4 + (2 * 9 * 18 + 18) * 4),
    )(x0f, x1f, Wf0, Wf1, bf)

    return out


# --------------------------------------------------------------------------
# Pure-JAX reference mirroring the PyTorch forward (NCHW conv, shared cnn0).
# --------------------------------------------------------------------------
def reference_forward(x0, x1, conv_w, conv_b, fc_w, fc_b):
    def conv(x):
        y = jax.lax.conv_general_dilated(
            x, conv_w, window_strides=(1, 1), padding=((1, 1), (1, 1)),
            dimension_numbers=("NCHW", "OIHW", "NCHW"))
        return y + conv_b.reshape(1, 1, 1, 1)
    B = x0.shape[0]
    y0 = conv(x0).reshape(B, -1)
    y1 = conv(x1).reshape(B, -1)
    cat = jnp.concatenate([y0, y1], axis=1)
    return cat @ fc_w.T + fc_b


if __name__ == "__main__":
    key = jax.random.PRNGKey(0)
    k_x0, k_x1, k_cw, k_cb, k_fw, k_fb, k_c1w, k_c1b = jax.random.split(key, 8)

    B = 2
    # Inputs: NCHW (B, 1, 3, 3), matching the module's expected shapes.
    x0 = jax.random.normal(k_x0, (B, 1, 3, 3), jnp.float32)
    x1 = jax.random.normal(k_x1, (B, 1, 3, 3), jnp.float32)

    # Parameters (shapes from nn.Conv2d(1,1,3,padding=1) / nn.Linear(18,18)).
    conv_w = jax.random.normal(k_cw, (1, 1, 3, 3), jnp.float32) * 0.3   # cnn0 weight
    conv_b = jax.random.normal(k_cb, (1,), jnp.float32) * 0.1           # cnn0 bias
    fc_w = jax.random.normal(k_fw, (18, 18), jnp.float32) * 0.2         # fc weight
    fc_b = jax.random.normal(k_fb, (18,), jnp.float32) * 0.1            # fc bias
    # cnn1 parameters exist in the module but are never used in forward().
    _cnn1_w = jax.random.normal(k_c1w, (1, 1, 3, 3), jnp.float32) * 0.3
    _cnn1_b = jax.random.normal(k_c1b, (1,), jnp.float32) * 0.1

    # Small-shape check (whole batch as one block).
    out = jax.block_until_ready(
        parallel_forward(x0, x1, conv_w, conv_b, fc_w, fc_b))
    ref = reference_forward(x0, x1, conv_w, conv_b, fc_w, fc_b)
    assert out.shape == (B, 18)
    assert jnp.allclose(out, ref, atol=1e-4, rtol=1e-4), (out, ref)

    # Exercise the gridded / ragged-batch path (multiple tiles + masked last block).
    B2 = 130
    kx2, kx3 = jax.random.split(k_x0)
    x0b = jax.random.normal(kx2, (B2, 1, 3, 3), jnp.float32)
    x1b = jax.random.normal(kx3, (B2, 1, 3, 3), jnp.float32)
    out2 = jax.block_until_ready(
        parallel_forward(x0b, x1b, conv_w, conv_b, fc_w, fc_b, tb_max=64))
    ref2 = reference_forward(x0b, x1b, conv_w, conv_b, fc_w, fc_b)
    assert out2.shape == (B2, 18)
    assert jnp.allclose(out2, ref2, atol=1e-4, rtol=1e-4)

    print("KERNEL_OK")
</pallas_src>

<mosaic_0001>
module attributes {stable_mosaic.version = 11 : i64} {
  func.func @fused_kernel(%arg0: i32, %arg1: memref<2x9xf32, #tpu.memory_space<vmem>>, %arg2: memref<2x9xf32, #tpu.memory_space<vmem>>, %arg3: memref<9x18xf32, #tpu.memory_space<vmem>>, %arg4: memref<9x18xf32, #tpu.memory_space<vmem>>, %arg5: memref<1x18xf32, #tpu.memory_space<vmem>>, %arg6: memref<2x18xf32, #tpu.memory_space<vmem>>) attributes {dimension_semantics = [#tpu.dimension_semantics<parallel>], iteration_bounds = array<i64: 1>, scalar_prefetch = 0 : i64, scratch_operands = 0 : i64, tpu.core_type = #tpu.core_type<tc>, window_params = [{transform_indices = @transform_0, window_bounds = array<i64: 2, 9>}, {transform_indices = @transform_1, window_bounds = array<i64: 2, 9>}, {pipeline_mode = #tpu.pipeline_mode<synchronous>, transform_indices = @transform_2, window_bounds = array<i64: 9, 18>}, {pipeline_mode = #tpu.pipeline_mode<synchronous>, transform_indices = @transform_3, window_bounds = array<i64: 9, 18>}, {pipeline_mode = #tpu.pipeline_mode<synchronous>, transform_indices = @transform_4, window_bounds = array<i64: 1, 18>}, {transform_indices = @transform_5, window_bounds = array<i64: 2, 18>}]} {
    %c0 = arith.constant 0 : index
    %c0_0 = arith.constant 0 : index
    %0 = vector.load %arg1[%c0, %c0_0] : memref<2x9xf32, #tpu.memory_space<vmem>>, vector<2x9xf32>
    %c0_1 = arith.constant 0 : index
    %c0_2 = arith.constant 0 : index
    %1 = vector.load %arg3[%c0_1, %c0_2] : memref<9x18xf32, #tpu.memory_space<vmem>>, vector<9x18xf32>
    %cst = arith.constant dense<0.000000e+00> : vector<2x18xf32>
    %2 = tpu.matmul %0, %1, %cst {dimension_numbers = #tpu.dot_dimension_numbers<[1], [0], [0], [1], [0, 0, 1, 1], [], []>} : vector<2x9xf32>, vector<9x18xf32>, vector<2x18xf32> -> vector<2x18xf32>
    %c0_3 = arith.constant 0 : index
    %c0_4 = arith.constant 0 : index
    %3 = vector.load %arg2[%c0_3, %c0_4] : memref<2x9xf32, #tpu.memory_space<vmem>>, vector<2x9xf32>
    %c0_5 = arith.constant 0 : index
    %c0_6 = arith.constant 0 : index
    %4 = vector.load %arg4[%c0_5, %c0_6] : memref<9x18xf32, #tpu.memory_space<vmem>>, vector<9x18xf32>
    %cst_7 = arith.constant dense<0.000000e+00> : vector<2x18xf32>
    %5 = tpu.matmul %3, %4, %cst_7 {dimension_numbers = #tpu.dot_dimension_numbers<[1], [0], [0], [1], [0, 0, 1, 1], [], []>} : vector<2x9xf32>, vector<9x18xf32>, vector<2x18xf32> -> vector<2x18xf32>
    %6 = arith.addf %2, %5 : vector<2x18xf32>
    %c0_8 = arith.constant 0 : index
    %c0_9 = arith.constant 0 : index
    %7 = vector.load %arg5[%c0_8, %c0_9] : memref<1x18xf32, #tpu.memory_space<vmem>>, vector<1x18xf32>
    %8 = vector.broadcast %7 : vector<1x18xf32> to vector<2x18xf32>
    %9 = arith.addf %6, %8 : vector<2x18xf32>
    %c0_10 = arith.constant 0 : index
    %c0_11 = arith.constant 0 : index
    %10 = vector.load %arg6[%c0_10, %c0_11] : memref<2x18xf32, #tpu.memory_space<vmem>>, vector<2x18xf32>
    tpu.vector_store %arg6[%c0_10, %c0_11], %9 {strides = array<i32>} : memref<2x18xf32, #tpu.memory_space<vmem>>, vector<2x18xf32>,
    return
  }
  func.func @transform_0(%arg0: i32) -> (i32, i32) {
    %c0_i32 = arith.constant 0 : i32
    %c0_i32_0 = arith.constant 0 : i32
    return %arg0, %c0_i32 : i32, i32
  }
  func.func @transform_1(%arg0: i32) -> (i32, i32) {
    %c0_i32 = arith.constant 0 : i32
    %c0_i32_0 = arith.constant 0 : i32
    return %arg0, %c0_i32 : i32, i32
  }
  func.func @transform_2(%arg0: i32) -> (i32, i32) {
    %c0_i32 = arith.constant 0 : i32
    %c0_i32_0 = arith.constant 0 : i32
    %c0_i32_1 = arith.constant 0 : i32
    return %c0_i32, %c0_i32_0 : i32, i32
  }
  func.func @transform_3(%arg0: i32) -> (i32, i32) {
    %c0_i32 = arith.constant 0 : i32
    %c0_i32_0 = arith.constant 0 : i32
    %c0_i32_1 = arith.constant 0 : i32
    return %c0_i32, %c0_i32_0 : i32, i32
  }
  func.func @transform_4(%arg0: i32) -> (i32, i32) {
    %c0_i32 = arith.constant 0 : i32
    %c0_i32_0 = arith.constant 0 : i32
    %c0_i32_1 = arith.constant 0 : i32
    return %c0_i32, %c0_i32_0 : i32, i32
  }
  func.func @transform_5(%arg0: i32) -> (i32, i32) {
    %c0_i32 = arith.constant 0 : i32
    %c0_i32_0 = arith.constant 0 : i32
    return %arg0, %c0_i32 : i32, i32
  }
}

</mosaic_0001>

<llo_original>
// kernel: tpu_custom_call.1
$region0: #{tpu_custom_call.1}
  #allocation0 [shape = 'u32[]', space=smem, size = 0x4, offset = 0x4, fixed_abs, tag = 'smem constant byte address 0x4 - core index']
  #allocation1 [shape = 'u32[144,128]{1,0:T(1,128)}', space=vmem, size = 0x12000, scoped, tag = 'internal scratch']
  %s0 = inlined_call_operand.hbm [shape: f32[2,9], index: 0, kind: input, shape index: {}]
  %s1 = inlined_call_operand.hbm [shape: f32[2,9], index: 1, kind: input, shape index: {}]
  %s2 = inlined_call_operand.hbm [shape: f32[9,18], index: 2, kind: input, shape index: {}]
  %s3 = inlined_call_operand.hbm [shape: f32[9,18], index: 3, kind: input, shape index: {}]
  %s4 = inlined_call_operand.vmem [shape: f32[1,18], index: 4, kind: input, shape index: {}]
  %s5 = inlined_call_operand.hbm [shape: f32[2,18], index: 5, kind: output, shape index: {}]
  %s6 = sld [smem:[#allocation0]]
  $region46: #{tpu_custom_call.1} parent=0
    _
  %s8 = ssub.s32 1, %s6
  %s9 = scalar_select 0, %s8, %s6
  $region1: #{tpu_custom_call.1} parent=0
    #allocation2 [shape = 'u8[1024]{0}', space=vmem, size = 0x400, scoped, tag = 'input window, operand 0, single buffered']
    #allocation3 [shape = 's32[1]{0}', space=sflag, size = 0x4, scoped, tag = 'scoped memory for tpu_custom_call.1']
    #allocation4 [shape = 's32[1]{0}', space=sflag, size = 0x4, scoped, tag = 'scoped memory for tpu_custom_call.1']
    #allocation5 [shape = 'u8[1024]{0}', space=vmem, size = 0x400, scoped, tag = 'input window, operand 1, single buffered']
    #allocation6 [shape = 's32[1]{0}', space=sflag, size = 0x4, scoped, tag = 'scoped memory for tpu_custom_call.1']
    #allocation7 [shape = 'u8[8192]{0}', space=vmem, size = 0x2000, scoped, tag = 'input window, operand 2, single buffered']
    #allocation8 [shape = 'u8[8192]{0}', space=vmem, size = 0x2000, scoped, tag = 'input window, operand 3, single buffered']
    #allocation9 [shape = 's32[1]{0}', space=sflag, size = 0x4, scoped, tag = 'scoped memory for tpu_custom_call.1']
    #allocation10 [shape = 'u8[1024]{0}', space=vmem, size = 0x400, scoped, tag = 'output window, operand 0, single buffered']
    %10 = vsyncpa [#allocation3], 0
    %11 = vsyncpa [#allocation6], 0
    %12 = vsyncpa [#allocation9], 0
    %13 = vsyncpa [#allocation4], 0
    // Predicated region
    $region2: #{tpu_custom_call.1} parent=1 // pred_check
      _
    $region3: #{tpu_custom_call.1} parent=1 // pred_check_branch
      %15 = sbr.rel (0) target = $region5
    $region4: #{tpu_custom_call.1} parent=1 // pred_region
      %s17 = ssub.s32 32, 32
      %18 = vsyncadd [#allocation3], %s17
      %s20 = sshll.u32 [#allocation2], 4
      %s21 = int_to_ptr.vmem [resolvable:$true] %s20
      %23 = dma.hbm_to_vmem [thread:$0]  %s0, 32, %s21, [#allocation3]
    $region5: #{tpu_custom_call.1} parent=1 // pred_fallthru
      _
    // Predicated region
    $region6: #{tpu_custom_call.1} parent=1 // pred_check
      _
    $region7: #{tpu_custom_call.1} parent=1 // pred_check_branch
      %25 = sbr.rel (0) target = $region9
    $region8: #{tpu_custom_call.1} parent=1 // pred_region
      %s27 = ssub.s32 32, 32
      %28 = vsyncadd [#allocation6], %s27
      %s30 = sshll.u32 [#allocation5], 4
      %s31 = int_to_ptr.vmem [resolvable:$true] %s30
      %33 = dma.hbm_to_vmem [thread:$0]  %s1, 32, %s31, [#allocation6]
    $region9: #{tpu_custom_call.1} parent=1 // pred_fallthru
      _
    // Predicated region
    $region10: #{tpu_custom_call.1} parent=1 // pred_check
      _
    $region11: #{tpu_custom_call.1} parent=1 // pred_check_branch
      %35 = sbr.rel (0) target = $region13
    $region12: #{tpu_custom_call.1} parent=1 // pred_region
      %s37 = ssub.s32 256, 256
      %38 = vsyncadd [#allocation6], %s37
      %s39 = sshll.u32 [#allocation7], 4
      %s40 = int_to_ptr.vmem [resolvable:$true] %s39
      %45 = dma.hbm_to_vmem [thread:$0]  %s2, 256, %s40, [#allocation6], 128, 128, 8
    $region13: #{tpu_custom_call.1} parent=1 // pred_fallthru
      _
    // Predicated region
    $region14: #{tpu_custom_call.1} parent=1 // pred_check
      _
    $region15: #{tpu_custom_call.1} parent=1 // pred_check_branch
      %47 = sbr.rel (0) target = $region17
    $region16: #{tpu_custom_call.1} parent=1 // pred_region
      %s49 = ssub.s32 256, 256
      %50 = vsyncadd [#allocation9], %s49
      %s51 = sshll.u32 [#allocation8], 4
      %s52 = int_to_ptr.vmem [resolvable:$true] %s51
      %57 = dma.hbm_to_vmem [thread:$0]  %s3, 256, %s52, [#allocation9], 128, 128, 8
    $region17: #{tpu_custom_call.1} parent=1 // pred_fallthru
      _
    // Predicated region
    $region18: #{tpu_custom_call.1} parent=1 // pred_check
      _
    $region19: #{tpu_custom_call.1} parent=1 // pred_check_branch
      %59 = sbr.rel (0) target = $region21
    $region20: #{tpu_custom_call.1} parent=1 // pred_region
      _
    $region21: #{tpu_custom_call.1} parent=1 // pred_fallthru
      _
    // Predicated region
    $region22: #{tpu_custom_call.1} parent=1 // pred_check
      _
    $region23: #{tpu_custom_call.1} parent=1 // pred_check_branch
      %61 = sbr.rel (0) target = $region25
    $region24: #{tpu_custom_call.1} parent=1 // pred_region
      %62 = dma.done [#allocation3], 32
    $region25: #{tpu_custom_call.1} parent=1 // pred_fallthru
      _
    // Predicated region
    $region26: #{tpu_custom_call.1} parent=1 // pred_check
      _
    $region27: #{tpu_custom_call.1} parent=1 // pred_check_branch
      %64 = sbr.rel (0) target = $region29
    $region28: #{tpu_custom_call.1} parent=1 // pred_region
      %65 = dma.done [#allocation6], 32
    $region29: #{tpu_custom_call.1} parent=1 // pred_fallthru
      _
    // Predicated region
    $region30: #{tpu_custom_call.1} parent=1 // pred_check
      _
    $region31: #{tpu_custom_call.1} parent=1 // pred_check_branch
      %67 = sbr.rel (0) target = $region33
    $region32: #{tpu_custom_call.1} parent=1 // pred_region
      %68 = dma.done [#allocation6], 256
    $region33: #{tpu_custom_call.1} parent=1 // pred_fallthru
      _
    // Predicated region
    $region34: #{tpu_custom_call.1} parent=1 // pred_check
      _
    $region35: #{tpu_custom_call.1} parent=1 // pred_check_branch
      %70 = sbr.rel (0) target = $region37
    $region36: #{tpu_custom_call.1} parent=1 // pred_region
      %71 = dma.done [#allocation9], 256
    $region37: #{tpu_custom_call.1} parent=1 // pred_fallthru
      _
    %v72 = vld [vmem:[#allocation2] sm:$0x3]
    %v73 = vld [vmem:[#allocation7] sm:$0xff]
    %v74 = vld [vmem:[#allocation7 + $0x8] sm:$0x1]
    %v75 = vld [vmem:[#allocation5] sm:$0x3]
    %v76 = vld [vmem:[#allocation8] sm:$0xff]
    %v77 = vld [vmem:[#allocation8 + $0x8] sm:$0x1]
    %vm78 = vcmask 72704
    %v80 = vsel %vm78, %v75, 0
    %vm82 = vcmask 1040384
    %v84 = vsel %vm82, %v77, 0
    %86 = vmatprep.subr.mxu0 0.0
    %87 = vmatpush1.msra.mxu0 0.0
    %88 = vmatprep.subr.mxu0 0.0
    %89 = vmatpush1.msra.mxu0 0.0
    %90 = vmatprep.subr.mxu0 0.0
    %91 = vmatpush1.msra.mxu0 0.0
    %92 = vmatprep.subr.mxu0 0.0
    %93 = vmatpush1.msra.mxu0 0.0
    %94 = vmatprep.subr.mxu0 0.0
    %95 = vmatpush1.msra.mxu0 0.0
    %96 = vmatprep.subr.mxu0 0.0
    %97 = vmatpush1.msra.mxu0 0.0
    %98 = vmatprep.subr.mxu0 0.0
    %99 = vmatpush1.msra.mxu0 0.0
    %100 = vmatprep.subr.mxu0 0.0
    %101 = vmatpush1.msra.mxu0 0.0
    %102 = vmatprep.subr.mxu0 0.0
    %103 = vmatpush1.msra.mxu0 0.0
    %104 = vmatprep.subr.mxu0 0.0
    %105 = vmatpush1.msra.mxu0 0.0
    %106 = vmatprep.subr.mxu0 0.0
    %107 = vmatpush1.msra.mxu0 0.0
    %108 = vmatprep.subr.mxu0 0.0
    %109 = vmatpush1.msra.mxu0 0.0
    %110 = vmatprep.subr.mxu0 0.0
    %111 = vmatpush1.msra.mxu0 0.0
    %112 = vmatprep.subr.mxu0 0.0
    %113 = vmatpush1.msra.mxu0 0.0
    %114 = vmatprep.subr.mxu0 0.0
    %115 = vmatpush1.msra.mxu0 %v84
    %116 = vmatprep.subr.mxu0 0.0
    %117 = vmatpush1.msra.mxu0 %v76
    %118 = vmatprep.subr.mxu0 0.0
    %119 = vmatpush2.msra.mxu0 0.0
    %120 = vmatprep.subr.mxu0 0.0
    %121 = vmatpush2.msra.mxu0 0.0
    %122 = vmatprep.subr.mxu0 0.0
    %123 = vmatpush2.msra.mxu0 0.0
    %124 = vmatprep.subr.mxu0 0.0
    %125 = vmatpush2.msra.mxu0 0.0
    %126 = vmatprep.subr.mxu0 0.0
    %127 = vmatpush2.msra.mxu0 0.0
    %128 = vmatprep.subr.mxu0 0.0
    %129 = vmatpush2.msra.mxu0 0.0
    %130 = vmatprep.subr.mxu0 0.0
    %131 = vmatpush2.msra.mxu0 0.0
    %132 = vmatprep.subr.mxu0 0.0
    %133 = vmatpush2.msra.mxu0 0.0
    %134 = vmatprep.subr.mxu0 0.0
    %135 = vmatpush2.msra.mxu0 0.0
    %136 = vmatprep.subr.mxu0 0.0
    %137 = vmatpush2.msra.mxu0 0.0
    %138 = vmatprep.subr.mxu0 0.0
    %139 = vmatpush2.msra.mxu0 0.0
    %140 = vmatprep.subr.mxu0 0.0
    %141 = vmatpush2.msra.mxu0 0.0
    %142 = vmatprep.subr.mxu0 0.0
    %143 = vmatpush2.msra.mxu0 0.0
    %144 = vmatprep.subr.mxu0 0.0
    %145 = vmatpush2.msra.mxu0 0.0
    %146 = vmatprep.subr.mxu0 0.0
    %147 = vmatpush2.msra.mxu0 0.0
    %148 = vmatprep.subr.mxu0 0.0
    %149 = vmatpush2.msra.mxu0 0.0
    %150 = vmatprep.mubr.f32.mxu0 0.0
    %151 = vmatmul.mubr.f32.gmra.mxu0 %v80
    %v152 = vpop.f32.mrf.mxu0
    %v153 = vadd.f32 0.0, %v152
    %v154 = vpop.f32.mrf.mxu0
    %155 = vdwg.mxu0
    %v157 = vsel %vm78, %v72, 0
    %v160 = vsel %vm82, %v74, 0
    %162 = vmatprep.subr.mxu0 0.0
    %163 = vmatpush1.msra.mxu0 0.0
    %164 = vmatprep.subr.mxu0 0.0
    %165 = vmatpush1.msra.mxu0 0.0
    %166 = vmatprep.subr.mxu0 0.0
    %167 = vmatpush1.msra.mxu0 0.0
    %168 = vmatprep.subr.mxu0 0.0
    %169 = vmatpush1.msra.mxu0 0.0
    %170 = vmatprep.subr.mxu0 0.0
    %171 = vmatpush1.msra.mxu0 0.0
    %172 = vmatprep.subr.mxu0 0.0
    %173 = vmatpush1.msra.mxu0 0.0
    %174 = vmatprep.subr.mxu0 0.0
    %175 = vmatpush1.msra.mxu0 0.0
    %176 = vmatprep.subr.mxu0 0.0
    %177 = vmatpush1.msra.mxu0 0.0
    %178 = vmatprep.subr.mxu0 0.0
    %179 = vmatpush1.msra.mxu0 0.0
    %180 = vmatprep.subr.mxu0 0.0
    %181 = vmatpush1.msra.mxu0 0.0
    %182 = vmatprep.subr.mxu0 0.0
    %183 = vmatpush1.msra.mxu0 0.0
    %184 = vmatprep.subr.mxu0 0.0
    %185 = vmatpush1.msra.mxu0 0.0
    %186 = vmatprep.subr.mxu0 0.0
    %187 = vmatpush1.msra.mxu0 0.0
    %188 = vmatprep.subr.mxu0 0.0
    %189 = vmatpush1.msra.mxu0 0.0
    %190 = vmatprep.subr.mxu0 0.0
    %191 = vmatpush1.msra.mxu0 %v160
    %192 = vmatprep.subr.mxu0 0.0
    %193 = vmatpush1.msra.mxu0 %v73
    %194 = vmatprep.subr.mxu0 0.0
    %195 = vmatpush2.msra.mxu0 0.0
    %196 = vmatprep.subr.mxu0 0.0
    %197 = vmatpush2.msra.mxu0 0.0
    %198 = vmatprep.subr.mxu0 0.0
    %199 = vmatpush2.msra.mxu0 0.0
    %200 = vmatprep.subr.mxu0 0.0
    %201 = vmatpush2.msra.mxu0 0.0
    %202 = vmatprep.subr.mxu0 0.0
    %203 = vmatpush2.msra.mxu0 0.0
    %204 = vmatprep.subr.mxu0 0.0
    %205 = vmatpush2.msra.mxu0 0.0
    %206 = vmatprep.subr.mxu0 0.0
    %207 = vmatpush2.msra.mxu0 0.0
    %208 = vmatprep.subr.mxu0 0.0
    %209 = vmatpush2.msra.mxu0 0.0
    %210 = vmatprep.subr.mxu0 0.0
    %211 = vmatpush2.msra.mxu0 0.0
    %212 = vmatprep.subr.mxu0 0.0
    %213 = vmatpush2.msra.mxu0 0.0
    %214 = vmatprep.subr.mxu0 0.0
    %215 = vmatpush2.msra.mxu0 0.0
    %216 = vmatprep.subr.mxu0 0.0
    %217 = vmatpush2.msra.mxu0 0.0
    %218 = vmatprep.subr.mxu0 0.0
    %219 = vmatpush2.msra.mxu0 0.0
    %220 = vmatprep.subr.mxu0 0.0
    %221 = vmatpush2.msra.mxu0 0.0
    %222 = vmatprep.subr.mxu0 0.0
    %223 = vmatpush2.msra.mxu0 0.0
    %224 = vmatprep.subr.mxu0 0.0
    %225 = vmatpush2.msra.mxu0 0.0
    %226 = vmatprep.mubr.f32.mxu0 0.0
    %227 = vmatmul.mubr.f32.gmra.mxu0 %v157
    %v228 = vpop.f32.mrf.mxu0
    %v229 = vadd.f32 %v153, %v228
    %v230 = vpop.f32.mrf.mxu0
    %231 = vdwg.mxu0
    %v232 = vld [vmem:[%s4] sm:$0x1]
    %v234 = vlaneseq
    %v235 = vshrl.u32 %v234, 7
    %v236 = vsub.s32 0, %v235
    %v237 = vrot.slane %v232, %v236
    %v239 = vadd.f32 %v229, %v237
    %vm240 = vcmask 140288
    %241 = vst.msk [vmem:[#allocation10] sm:$0x3] %vm240, %v239
    // Predicated region
    $region38: #{tpu_custom_call.1} parent=1 // pred_check
      _
    $region39: #{tpu_custom_call.1} parent=1 // pred_check_branch
      %243 = sbr.rel (0) target = $region41
    $region40: #{tpu_custom_call.1} parent=1 // pred_region
      %s245 = ssub.s32 32, 32
      %246 = vsyncadd [#allocation4], %s245
      %s248 = sshll.u32 [#allocation10], 4
      %s249 = int_to_ptr.vmem [resolvable:$true] %s248
      %251 = dma.vmem_to_hbm [thread:$0]  %s249, 32, %s5, [#allocation4]
    $region41: #{tpu_custom_call.1} parent=1 // pred_fallthru
      _
    // Predicated region
    $region42: #{tpu_custom_call.1} parent=1 // pred_check
      _
    $region43: #{tpu_custom_call.1} parent=1 // pred_check_branch
      %253 = sbr.rel (0) target = $region45
    $region44: #{tpu_custom_call.1} parent=1 // pred_region
      %254 = dma.done [#allocation4], 32
    $region45: #{tpu_custom_call.1} parent=1 // pred_fallthru
      _
    %255 = vsyncpa [#allocation3], 1
    %256 = vsyncpa [#allocation6], 1
    %257 = vsyncpa [#allocation9], 1
    %258 = vsyncpa [#allocation4], 1

</llo_original>
